<compile_context>
chip_gen: v5e
topology: v5e:2x2
jax: 0.10.0
libtpu: 0.0.40
codegen_flags: <defaults>
</compile_context>

<pallas_src>
import functools

import jax
import jax.numpy as jnp
from jax.experimental import pallas as pl
from jax.experimental.pallas import tpu as pltpu

_SUBLANE = 8
_WIDTH = 1024                   # lane-dense last dim (8 vregs) -> big DMA bursts
_GRAIN = _SUBLANE * _WIDTH      # 8192: alignment quantum of the kernel body
_DEFAULT_BLOCK_ROWS = 512       # (512,1024) f32 = 2 MiB per stream per buffer


def _focal_loss_kernel(pred_ref, tgt_ref, sums_ref, *elem_refs,
                       alpha, gamma, rem, block_rows, needs_mask):
    x = pred_ref[...]                                   # (block_rows, W) f32 logits
    t = tgt_ref[...].astype(jnp.float32)                # binary targets (i8/bf16/f32)

    # Numerically stable BCE-with-logits; e = exp(-|x|) is reused for sigmoid.
    e = jnp.exp(-jnp.abs(x))
    bce = jnp.maximum(x, 0.0) - x * t + jnp.log(1.0 + e)

    # sigmoid(x) via EUP approx reciprocal + one Newton step (rel err ~1e-7).
    d = 1.0 + e
    inv = pl.reciprocal(d, approx=True)
    inv = inv * (2.0 - d * inv)
    probs = jnp.where(x >= 0.0, inv, e * inv)

    # Folded algebra (constants folded at trace time):
    #   p_t = (1-t) + (2t-1)*p ;  1-p_t = t - (2t-1)*p ;  alpha_t = (1-a)+(2a-1)*t
    sp = (2.0 * t - 1.0) * probs
    p_t = (1.0 - t) + sp
    one_m_pt = t - sp
    alpha_t = (1.0 - alpha) + (2.0 * alpha - 1.0) * t

    if gamma == 0.0:
        pw = jnp.ones_like(one_m_pt)
    elif float(gamma).is_integer() and 0.0 < gamma <= 8.0:
        # Repeated multiply for integer gammas (incl. default 2.0): avoids the
        # exp(gamma*log(.)) EUP path and its log(0) corner case.
        pw = one_m_pt
        for _ in range(int(gamma) - 1):
            pw = pw * one_m_pt
    else:
        pw = jnp.power(one_m_pt, gamma)

    focal_weight = alpha_t * pw
    focal = focal_weight * bce

    # Per-element focal loss only materialized for reduction == 'none'.
    # (Out-of-bounds rows of a ragged last block are dropped by Pallas.)
    if elem_refs:
        elem_refs[0][...] = focal

    def _store(valid):
        if valid is None:
            f, w, p = focal, focal_weight, p_t
        else:
            f = jnp.where(valid, focal, 0.0)
            w = jnp.where(valid, focal_weight, 0.0)
            p = jnp.where(valid, p_t, 0.0)
        # Per-lane partial sums (sublane reduction only -> pure VALU adds); the
        # wrapper finishes the tiny cross-lane / cross-block reduction.
        row_f = jnp.sum(f, axis=0, keepdims=True)       # (1, W)
        row_w = jnp.sum(w, axis=0, keepdims=True)
        row_p = jnp.sum(p, axis=0, keepdims=True)
        sums_ref[...] = jnp.concatenate([row_f, row_w, row_p], axis=0)[None]

    if not needs_mask:
        _store(None)
    else:
        last = pl.num_programs(0) - 1

        @pl.when(pl.program_id(0) != last)
        def _():
            _store(None)                                 # interior blocks: no mask work

        @pl.when(pl.program_id(0) == last)
        def _():
            # `rem` = number of valid elements in the last block (static Python
            # int) -> block-local comparison, no int32 overflow for large n.
            if rem % _WIDTH == 0:
                valid = (jax.lax.broadcasted_iota(jnp.int32, (block_rows, _WIDTH), 0)
                         < (rem // _WIDTH))
            else:
                lidx = (jax.lax.broadcasted_iota(jnp.int32, (block_rows, _WIDTH), 0) * _WIDTH
                        + jax.lax.broadcasted_iota(jnp.int32, (block_rows, _WIDTH), 1))
                valid = lidx < rem
            _store(valid)


def _focal_terms_jnp(x, t, alpha, gamma):
    """Plain-JAX focal terms for the (<8192-element) tail."""
    e = jnp.exp(-jnp.abs(x))
    bce = jnp.maximum(x, 0.0) - x * t + jnp.log1p(e)
    probs = jax.nn.sigmoid(x)
    p_t = probs * t + (1.0 - probs) * (1.0 - t)
    alpha_t = alpha * t + (1.0 - alpha) * (1.0 - t)
    fw = alpha_t * (1.0 - p_t) ** gamma
    return fw * bce, fw, p_t


def focal_loss(predictions, targets, *, alpha: float = 0.25, gamma: float = 2.0,
               reduction: str = "mean", block_rows: int = _DEFAULT_BLOCK_ROWS):
    """Returns (loss, stats) mirroring FocalLoss.forward (stats are JAX scalars)."""
    pred_in = jnp.asarray(predictions, jnp.float32)
    orig_shape = pred_in.shape
    x = pred_in.reshape(-1)
    t_raw = jnp.asarray(targets).reshape(-1)
    n = x.shape[0]
    assert n > 0, "focal_loss requires at least one element"
    assert t_raw.shape[0] == n, "targets must match predictions"

    # Narrow the target stream when it is already integral/boolean (binary targets).
    if jnp.issubdtype(t_raw.dtype, jnp.floating):
        t_feed = t_raw
    else:
        t_feed = t_raw.astype(jnp.int8)

    n_body = (n // _GRAIN) * _GRAIN
    if n_body == 0:
        # Tiny input (e.g. a verification batch): one (8,1024) slab; the
        # <=32 KiB pad is negligible and keeps everything on the kernel path.
        pad = _GRAIN - n
        pred_body = jnp.pad(x, (0, pad)).reshape(_SUBLANE, _WIDTH)
        tgt_body = jnp.pad(t_feed, (0, pad)).reshape(_SUBLANE, _WIDTH)
        n_valid = n
        has_tail = False
    else:
        rows_body = n_body // _WIDTH
        # Aligned prefix; when n is a multiple of 8192 this is a free bitcast
        # reshape (no jnp.pad round trip of the full streams).
        pred_body = x[:n_body].reshape(rows_body, _WIDTH)
        tgt_body = t_feed[:n_body].reshape(rows_body, _WIDTH)
        n_valid = n_body
        has_tail = n_body < n

    rows = pred_body.shape[0]
    if rows <= block_rows:
        block_rows_eff = rows                      # single block == full array dims
    else:
        # Multiple of 32 keeps the int8 target tile legal (and f32's 8-row tile).
        block_rows_eff = max(32, (min(block_rows, rows) // 32) * 32)
    grid = pl.cdiv(rows, block_rows_eff)
    block_elems = block_rows_eff * _WIDTH
    rem = int(n_valid - (grid - 1) * block_elems)  # valid elems in last block (static)
    needs_mask = (grid * block_elems != n_valid)

    emit_elem = reduction not in ("mean", "sum")

    kernel = functools.partial(
        _focal_loss_kernel, alpha=float(alpha), gamma=float(gamma),
        rem=rem, block_rows=block_rows_eff, needs_mask=needs_mask)

    out_shape = [jax.ShapeDtypeStruct((grid, 3, _WIDTH), jnp.float32)]
    out_specs = [pl.BlockSpec((1, 3, _WIDTH), lambda i: (i, 0, 0))]
    if emit_elem:
        out_shape.append(jax.ShapeDtypeStruct((rows, _WIDTH), jnp.float32))
        out_specs.append(pl.BlockSpec((block_rows_eff, _WIDTH), lambda i: (i, 0)))

    results = pl.pallas_call(
        kernel,
        grid=(grid,),
        out_shape=tuple(out_shape),
        in_specs=[pl.BlockSpec((block_rows_eff, _WIDTH), lambda i: (i, 0)),
                  pl.BlockSpec((block_rows_eff, _WIDTH), lambda i: (i, 0))],
        out_specs=tuple(out_specs),
        compiler_params=pltpu.CompilerParams(
            dimension_semantics=("parallel",)),
    )(pred_body, tgt_body)

    partials = results[0]                          # (grid, 3, W) per-lane partials
    totals = jnp.sum(partials, axis=(0, 2))        # (3,)
    sum_focal, sum_weight, sum_pt = totals[0], totals[1], totals[2]

    if emit_elem:
        body_elem = results[1].reshape(-1)
        if n_valid < body_elem.shape[0]:
            body_elem = body_elem[:n_valid]
        elem_parts = [body_elem]

    if has_tail:
        tx = x[n_body:]
        tt = t_feed[n_body:].astype(jnp.float32)
        tail_focal, tail_w, tail_pt = _focal_terms_jnp(tx, tt, float(alpha), float(gamma))
        sum_focal = sum_focal + jnp.sum(tail_focal)
        sum_weight = sum_weight + jnp.sum(tail_w)
        sum_pt = sum_pt + jnp.sum(tail_pt)
        if emit_elem:
            elem_parts.append(tail_focal)

    inv_n = 1.0 / float(n)
    if reduction == "mean":
        loss = sum_focal * inv_n
        focal_stat = loss
    elif reduction == "sum":
        loss = sum_focal
        focal_stat = loss
    else:  # 'none'
        elem = elem_parts[0] if len(elem_parts) == 1 else jnp.concatenate(elem_parts)
        loss = elem.reshape(orig_shape)
        focal_stat = sum_focal * inv_n

    # TODO(synk): original module returns stats via .item() (host sync); JAX
    # scalars are returned instead to stay jit/grad friendly.
    stats = {
        "focal_loss": focal_stat,
        "avg_focal_weight": sum_weight * inv_n,
        "avg_confidence": sum_pt * inv_n,
    }
    return loss, stats


if __name__ == "__main__":
    def ref_focal(x, t, alpha, gamma, reduction):
        t = t.astype(jnp.float32)
        bce = jnp.maximum(x, 0.0) - x * t + jnp.log1p(jnp.exp(-jnp.abs(x)))
        probs = jax.nn.sigmoid(x)
        p_t = probs * t + (1 - probs) * (1 - t)
        alpha_t = alpha * t + (1 - alpha) * (1 - t)
        fl = alpha_t * (1 - p_t) ** gamma * bce
        if reduction == "mean":
            return jnp.mean(fl)
        if reduction == "sum":
            return jnp.sum(fl)
        return fl

    key = jax.random.PRNGKey(0)
    kp, kt = jax.random.split(key)

    # Small, module-natural shape: [batch] verification logits.
    batch = 8
    preds = jax.random.normal(kp, (batch,), jnp.float32) * 2.0
    tgts = (jax.random.uniform(kt, (batch,)) > 0.5).astype(jnp.float32)

    loss_m, stats = focal_loss(preds, tgts, reduction="mean")
    jax.block_until_ready(loss_m)
    assert jnp.allclose(loss_m, ref_focal(preds, tgts, 0.25, 2.0, "mean"),
                        rtol=1e-5, atol=1e-6)

    loss_s, _ = focal_loss(preds, tgts, reduction="sum")
    assert jnp.allclose(loss_s, ref_focal(preds, tgts, 0.25, 2.0, "sum"),
                        rtol=1e-5, atol=1e-6)

    loss_n, _ = focal_loss(preds, tgts, reduction="none")
    assert loss_n.shape == (batch,)
    assert jnp.allclose(loss_n, ref_focal(preds, tgts, 0.25, 2.0, "none"),
                        rtol=1e-5, atol=1e-5)

    probs_ref = jax.nn.sigmoid(preds)
    p_t_ref = probs_ref * tgts + (1 - probs_ref) * (1 - tgts)
    assert jnp.allclose(stats["avg_confidence"], jnp.mean(p_t_ref),
                        rtol=1e-5, atol=1e-6)

    # Non-integer gamma exercises the jnp.power fallback path.
    loss_g, _ = focal_loss(preds, tgts, alpha=0.4, gamma=1.5, reduction="mean")
    assert jnp.allclose(loss_g, ref_focal(preds, tgts, 0.4, 1.5, "mean"),
                        rtol=1e-5, atol=1e-6)

    # Exactly aligned size: free-bitcast body, no mask, no tail, int8 targets.
    k1, k2 = jax.random.split(jax.random.PRNGKey(1))
    n_al = 2 * _GRAIN
    preds_a = jax.random.normal(k1, (n_al,), jnp.float32) * 2.0
    tgts_a = jax.random.uniform(k2, (n_al,)) > 0.5          # bool -> int8 stream
    loss_a, _ = focal_loss(preds_a, tgts_a, reduction="mean")
    assert jnp.allclose(loss_a, ref_focal(preds_a, tgts_a, 0.25, 2.0, "mean"),
                        rtol=1e-4, atol=1e-6)

    # Unaligned size + small block_rows: multi-block grid, ragged last block
    # (pl.when mask on the last block only) and a plain-JAX tail.
    k3, k4 = jax.random.split(jax.random.PRNGKey(2))
    n_big = 5 * _GRAIN + 123
    preds_b = jax.random.normal(k3, (n_big,), jnp.float32) * 2.0
    tgts_b = jax.random.uniform(k4, (n_big,)) > 0.5
    loss_b, _ = focal_loss(preds_b, tgts_b, reduction="mean", block_rows=8)
    jax.block_until_ready(loss_b)
    assert jnp.allclose(loss_b, ref_focal(preds_b, tgts_b, 0.25, 2.0, "mean"),
                        rtol=1e-4, atol=1e-6)

    loss_bn, _ = focal_loss(preds_b, tgts_b, reduction="none", block_rows=8)
    assert loss_bn.shape == (n_big,)
    assert jnp.allclose(loss_bn, ref_focal(preds_b, tgts_b, 0.25, 2.0, "none"),
                        rtol=1e-4, atol=1e-5)

    print("KERNEL_OK")
</pallas_src>

<mosaic_0001>
module attributes {stable_mosaic.version = 11 : i64} {
  func.func @_focal_loss_kernel(%arg0: i32, %arg1: memref<8x1024xf32, #tpu.memory_space<vmem>>, %arg2: memref<8x1024xf32, #tpu.memory_space<vmem>>, %arg3: memref<1x3x1024xf32, #tpu.memory_space<vmem>>) attributes {dimension_semantics = [#tpu.dimension_semantics<parallel>], iteration_bounds = array<i64: 1>, scalar_prefetch = 0 : i64, scratch_operands = 0 : i64, tpu.core_type = #tpu.core_type<tc>, window_params = [{transform_indices = @transform_0, window_bounds = array<i64: 8, 1024>}, {transform_indices = @transform_1, window_bounds = array<i64: 8, 1024>}, {transform_indices = @transform_2, window_bounds = array<i64: 1, 3, 1024>}]} {
    %c0 = arith.constant 0 : index
    %c0_0 = arith.constant 0 : index
    %0 = vector.load %arg1[%c0, %c0_0] : memref<8x1024xf32, #tpu.memory_space<vmem>>, vector<8x1024xf32>
    %c0_1 = arith.constant 0 : index
    %c0_2 = arith.constant 0 : index
    %1 = vector.load %arg2[%c0_1, %c0_2] : memref<8x1024xf32, #tpu.memory_space<vmem>>, vector<8x1024xf32>
    %2 = math.absf %0 : vector<8x1024xf32>
    %cst = arith.constant 0.000000e+00 : f32
    %3 = vector.broadcast %cst : f32 to vector<8x1024xf32>
    %4 = arith.subf %3, %2 : vector<8x1024xf32>
    %5 = math.exp %4 : vector<8x1024xf32>
    %cst_3 = arith.constant 0.000000e+00 : f32
    %6 = vector.broadcast %cst_3 : f32 to vector<8x1024xf32>
    %7 = arith.maximumf %0, %6 : vector<8x1024xf32>
    %8 = arith.mulf %0, %1 : vector<8x1024xf32>
    %9 = arith.subf %7, %8 : vector<8x1024xf32>
    %cst_4 = arith.constant 1.000000e+00 : f32
    %10 = vector.broadcast %cst_4 : f32 to vector<8x1024xf32>
    %11 = arith.addf %10, %5 : vector<8x1024xf32>
    %12 = math.log %11 : vector<8x1024xf32>
    %13 = arith.addf %9, %12 : vector<8x1024xf32>
    %cst_5 = arith.constant 1.000000e+00 : f32
    %14 = vector.broadcast %cst_5 : f32 to vector<8x1024xf32>
    %15 = arith.addf %14, %5 : vector<8x1024xf32>
    %16 = tpu.reciprocal %15 {approx = true} : vector<8x1024xf32> -> vector<8x1024xf32>
    %17 = arith.mulf %15, %16 : vector<8x1024xf32>
    %cst_6 = arith.constant 2.000000e+00 : f32
    %18 = vector.broadcast %cst_6 : f32 to vector<8x1024xf32>
    %19 = arith.subf %18, %17 : vector<8x1024xf32>
    %20 = arith.mulf %16, %19 : vector<8x1024xf32>
    %cst_7 = arith.constant 0.000000e+00 : f32
    %21 = vector.broadcast %cst_7 : f32 to vector<8x1024xf32>
    %22 = arith.cmpf oge, %0, %21 : vector<8x1024xf32>
    %23 = arith.mulf %5, %20 : vector<8x1024xf32>
    %24 = arith.select %22, %20, %23 : vector<8x1024xi1>, vector<8x1024xf32>
    %cst_8 = arith.constant 2.000000e+00 : f32
    %25 = vector.broadcast %cst_8 : f32 to vector<8x1024xf32>
    %26 = arith.mulf %25, %1 : vector<8x1024xf32>
    %cst_9 = arith.constant 1.000000e+00 : f32
    %27 = vector.broadcast %cst_9 : f32 to vector<8x1024xf32>
    %28 = arith.subf %26, %27 : vector<8x1024xf32>
    %29 = arith.mulf %28, %24 : vector<8x1024xf32>
    %cst_10 = arith.constant 1.000000e+00 : f32
    %30 = vector.broadcast %cst_10 : f32 to vector<8x1024xf32>
    %31 = arith.subf %30, %1 : vector<8x1024xf32>
    %32 = arith.addf %31, %29 : vector<8x1024xf32>
    %33 = arith.subf %1, %29 : vector<8x1024xf32>
    %cst_11 = arith.constant -5.000000e-01 : f32
    %34 = vector.broadcast %cst_11 : f32 to vector<8x1024xf32>
    %35 = arith.mulf %34, %1 : vector<8x1024xf32>
    %cst_12 = arith.constant 7.500000e-01 : f32
    %36 = vector.broadcast %cst_12 : f32 to vector<8x1024xf32>
    %37 = arith.addf %36, %35 : vector<8x1024xf32>
    %38 = arith.mulf %33, %33 : vector<8x1024xf32>
    %39 = arith.mulf %37, %38 : vector<8x1024xf32>
    %40 = arith.mulf %39, %13 : vector<8x1024xf32>
    %c0_i32 = arith.constant 0 : i32
    %41 = arith.cmpi ne, %arg0, %c0_i32 : i32
    %42 = arith.extui %41 : i1 to i32
    %c0_i32_13 = arith.constant 0 : i32
    %43 = arith.cmpi ne, %42, %c0_i32_13 : i32
    scf.if %43 {
      %cst_16 = arith.constant dense<0.000000e+00> : vector<1024xf32>
      %47 = vector.multi_reduction <add>, %40, %cst_16 [0] : vector<8x1024xf32> to vector<1024xf32>
      %48 = vector.shape_cast %47 : vector<1024xf32> to vector<1x1024xf32>
      %cst_17 = arith.constant dense<0.000000e+00> : vector<1024xf32>
      %49 = vector.multi_reduction <add>, %39, %cst_17 [0] : vector<8x1024xf32> to vector<1024xf32>
      %50 = vector.shape_cast %49 : vector<1024xf32> to vector<1x1024xf32>
      %cst_18 = arith.constant dense<0.000000e+00> : vector<1024xf32>
      %51 = vector.multi_reduction <add>, %32, %cst_18 [0] : vector<8x1024xf32> to vector<1024xf32>
      %52 = vector.shape_cast %51 : vector<1024xf32> to vector<1x1024xf32>
      %53 = tpu.concatenate %48, %50, %52 in 0 : vector<1x1024xf32>, vector<1x1024xf32>, vector<1x1024xf32> -> vector<3x1024xf32>
      %54 = vector.shape_cast %53 : vector<3x1024xf32> to vector<1x3x1024xf32>
      %c0_19 = arith.constant 0 : index
      %c0_20 = arith.constant 0 : index
      %c0_21 = arith.constant 0 : index
      %55 = vector.load %arg3[%c0_19, %c0_20, %c0_21] : memref<1x3x1024xf32, #tpu.memory_space<vmem>>, vector<1x3x1024xf32>
      tpu.vector_store %arg3[%c0_19, %c0_20, %c0_21], %54 {strides = array<i32>} : memref<1x3x1024xf32, #tpu.memory_space<vmem>>, vector<1x3x1024xf32>,
    } else {
    }
    %c0_i32_14 = arith.constant 0 : i32
    %44 = arith.cmpi eq, %arg0, %c0_i32_14 : i32
    %45 = arith.extui %44 : i1 to i32
    %c0_i32_15 = arith.constant 0 : i32
    %46 = arith.cmpi ne, %45, %c0_i32_15 : i32
    scf.if %46 {
      %47 = tpu.iota {dimensions = array<i32: 0>} : vector<8x1024xi32>
      %c1024_i32 = arith.constant 1024 : i32
      %48 = vector.broadcast %c1024_i32 : i32 to vector<8x1024xi32>
      %49 = arith.muli %47, %48 : vector<8x1024xi32>
      %50 = tpu.iota {dimensions = array<i32: 1>} : vector<8x1024xi32>
      %51 = arith.addi %49, %50 : vector<8x1024xi32>
      %c8_i32 = arith.constant 8 : i32
      %52 = vector.broadcast %c8_i32 : i32 to vector<8x1024xi32>
      %53 = arith.cmpi slt, %51, %52 : vector<8x1024xi32>
      %cst_16 = arith.constant 0.000000e+00 : f32
      %54 = vector.broadcast %cst_16 : f32 to vector<8x1024xf32>
      %55 = arith.select %53, %40, %54 : vector<8x1024xi1>, vector<8x1024xf32>
      %cst_17 = arith.constant 0.000000e+00 : f32
      %56 = vector.broadcast %cst_17 : f32 to vector<8x1024xf32>
      %57 = arith.select %53, %39, %56 : vector<8x1024xi1>, vector<8x1024xf32>
      %cst_18 = arith.constant 0.000000e+00 : f32
      %58 = vector.broadcast %cst_18 : f32 to vector<8x1024xf32>
      %59 = arith.select %53, %32, %58 : vector<8x1024xi1>, vector<8x1024xf32>
      %cst_19 = arith.constant dense<0.000000e+00> : vector<1024xf32>
      %60 = vector.multi_reduction <add>, %55, %cst_19 [0] : vector<8x1024xf32> to vector<1024xf32>
      %61 = vector.shape_cast %60 : vector<1024xf32> to vector<1x1024xf32>
      %cst_20 = arith.constant dense<0.000000e+00> : vector<1024xf32>
      %62 = vector.multi_reduction <add>, %57, %cst_20 [0] : vector<8x1024xf32> to vector<1024xf32>
      %63 = vector.shape_cast %62 : vector<1024xf32> to vector<1x1024xf32>
      %cst_21 = arith.constant dense<0.000000e+00> : vector<1024xf32>
      %64 = vector.multi_reduction <add>, %59, %cst_21 [0] : vector<8x1024xf32> to vector<1024xf32>
      %65 = vector.shape_cast %64 : vector<1024xf32> to vector<1x1024xf32>
      %66 = tpu.concatenate %61, %63, %65 in 0 : vector<1x1024xf32>, vector<1x1024xf32>, vector<1x1024xf32> -> vector<3x1024xf32>
      %67 = vector.shape_cast %66 : vector<3x1024xf32> to vector<1x3x1024xf32>
      %c0_22 = arith.constant 0 : index
      %c0_23 = arith.constant 0 : index
      %c0_24 = arith.constant 0 : index
      %68 = vector.load %arg3[%c0_22, %c0_23, %c0_24] : memref<1x3x1024xf32, #tpu.memory_space<vmem>>, vector<1x3x1024xf32>
      tpu.vector_store %arg3[%c0_22, %c0_23, %c0_24], %67 {strides = array<i32>} : memref<1x3x1024xf32, #tpu.memory_space<vmem>>, vector<1x3x1024xf32>,
    } else {
    }
    return
  }
  func.func @transform_0(%arg0: i32) -> (i32, i32) {
    %c0_i32 = arith.constant 0 : i32
    %c0_i32_0 = arith.constant 0 : i32
    return %arg0, %c0_i32 : i32, i32
  }
  func.func @transform_1(%arg0: i32) -> (i32, i32) {
    %c0_i32 = arith.constant 0 : i32
    %c0_i32_0 = arith.constant 0 : i32
    return %arg0, %c0_i32 : i32, i32
  }
  func.func @transform_2(%arg0: i32) -> (i32, i32, i32) {
    %c0_i32 = arith.constant 0 : i32
    %c0_i32_0 = arith.constant 0 : i32
    %c0_i32_1 = arith.constant 0 : i32
    return %arg0, %c0_i32, %c0_i32_0 : i32, i32, i32
  }
}

</mosaic_0001>

<llo_original>
// kernel: tpu_custom_call.1
$region0: #{tpu_custom_call.1}
  #allocation0 [shape = 'u32[]', space=smem, size = 0x4, offset = 0x4, fixed_abs, tag = 'smem constant byte address 0x4 - core index']
  #allocation1 [shape = 'u32[72,128]{1,0:T(1,128)}', space=vmem, size = 0x9000, scoped, tag = 'internal scratch']
  %s0 = inlined_call_operand.hbm [shape: f32[8,1024], index: 0, kind: input, shape index: {}]
  %s1 = inlined_call_operand.hbm [shape: f32[8,1024], index: 1, kind: input, shape index: {}]
  %s2 = inlined_call_operand.vmem [shape: f32[1,3,1024], index: 2, kind: output, shape index: {}]
  %s3 = sld [smem:[#allocation0]]
  $region34: #{tpu_custom_call.1} parent=0
    _
  %s5 = ssub.s32 1, %s3
  %s6 = scalar_select 0, %s5, %s3
  $region1: #{tpu_custom_call.1} parent=0
    #allocation2 [shape = 'u8[32768]{0}', space=vmem, size = 0x8000, scoped, tag = 'input window, operand 0, single buffered']
    #allocation3 [shape = 's32[1]{0}', space=sflag, size = 0x4, scoped, tag = 'scoped memory for tpu_custom_call.1']
    #allocation4 [shape = 'u8[32768]{0}', space=vmem, size = 0x8000, scoped, tag = 'input window, operand 1, single buffered']
    #allocation5 [shape = 's32[1]{0}', space=sflag, size = 0x4, scoped, tag = 'scoped memory for tpu_custom_call.1']
    %7 = vsyncpa [#allocation3], 0
    %8 = vsyncpa [#allocation5], 0
    // Predicated region
    $region2: #{tpu_custom_call.1} parent=1 // pred_check
      _
    $region3: #{tpu_custom_call.1} parent=1 // pred_check_branch
      %10 = sbr.rel (0) target = $region5
    $region4: #{tpu_custom_call.1} parent=1 // pred_region
      %12 = vsyncadd [#allocation3], 0
      %s14 = sshll.u32 %s0, 4
      %s15 = int_to_ptr.hbm [resolvable:$true] %s14
      %s16 = sshll.u32 [#allocation2], 4
      %s17 = int_to_ptr.vmem [resolvable:$true] %s16
      %19 = dma.hbm_to_vmem [thread:$0]  %s15, 1024, %s17, [#allocation3]
    $region5: #{tpu_custom_call.1} parent=1 // pred_fallthru
      _
    // Predicated region
    $region6: #{tpu_custom_call.1} parent=1 // pred_check
      _
    $region7: #{tpu_custom_call.1} parent=1 // pred_check_branch
      %21 = sbr.rel (0) target = $region9
    $region8: #{tpu_custom_call.1} parent=1 // pred_region
      %23 = vsyncadd [#allocation5], 0
      %s25 = sshll.u32 %s1, 4
      %s26 = int_to_ptr.hbm [resolvable:$true] %s25
      %s27 = sshll.u32 [#allocation4], 4
      %s28 = int_to_ptr.vmem [resolvable:$true] %s27
      %30 = dma.hbm_to_vmem [thread:$0]  %s26, 1024, %s28, [#allocation5]
    $region9: #{tpu_custom_call.1} parent=1 // pred_fallthru
      _
    // Predicated region
    $region10: #{tpu_custom_call.1} parent=1 // pred_check
      _
    $region11: #{tpu_custom_call.1} parent=1 // pred_check_branch
      %32 = sbr.rel (0) target = $region13
    $region12: #{tpu_custom_call.1} parent=1 // pred_region
      %34 = dma.done [#allocation3], 1024
    $region13: #{tpu_custom_call.1} parent=1 // pred_fallthru
      _
    // Predicated region
    $region14: #{tpu_custom_call.1} parent=1 // pred_check
      _
    $region15: #{tpu_custom_call.1} parent=1 // pred_check_branch
      %36 = sbr.rel (0) target = $region17
    $region16: #{tpu_custom_call.1} parent=1 // pred_region
      %38 = dma.done [#allocation5], 1024
    $region17: #{tpu_custom_call.1} parent=1 // pred_fallthru
      _
    %v39 = vld [vmem:[#allocation2] sm:$0xff]
    %v40 = vld [vmem:[#allocation2 + $0x8] sm:$0xff]
    %v41 = vld [vmem:[#allocation2 + $0x10] sm:$0xff]
    %v42 = vld [vmem:[#allocation2 + $0x18] sm:$0xff]
    %v43 = vld [vmem:[#allocation2 + $0x20] sm:$0xff]
    %v44 = vld [vmem:[#allocation2 + $0x28] sm:$0xff]
    %v45 = vld [vmem:[#allocation2 + $0x30] sm:$0xff]
    %v46 = vld [vmem:[#allocation2 + $0x38] sm:$0xff]
    %v47 = vld [vmem:[#allocation4] sm:$0xff]
    %v48 = vld [vmem:[#allocation4 + $0x8] sm:$0xff]
    %v49 = vld [vmem:[#allocation4 + $0x10] sm:$0xff]
    %v50 = vld [vmem:[#allocation4 + $0x18] sm:$0xff]
    %v51 = vld [vmem:[#allocation4 + $0x20] sm:$0xff]
    %v52 = vld [vmem:[#allocation4 + $0x28] sm:$0xff]
    %v53 = vld [vmem:[#allocation4 + $0x30] sm:$0xff]
    %v54 = vld [vmem:[#allocation4 + $0x38] sm:$0xff]
    %v55 = vand.u32 2147483647, %v39
    %v56 = vand.u32 2147483647, %v40
    %v57 = vand.u32 2147483647, %v41
    %v58 = vand.u32 2147483647, %v42
    %v59 = vand.u32 2147483647, %v43
    %v60 = vand.u32 2147483647, %v44
    %v61 = vand.u32 2147483647, %v45
    %v62 = vand.u32 2147483647, %v46
    %v63 = vsub.f32 0.0, %v55
    %v64 = vsub.f32 0.0, %v56
    %v65 = vsub.f32 0.0, %v57
    %v66 = vsub.f32 0.0, %v58
    %v67 = vsub.f32 0.0, %v59
    %v68 = vsub.f32 0.0, %v60
    %v69 = vsub.f32 0.0, %v61
    %v70 = vsub.f32 0.0, %v62
    %v71 = vmul.f32 %v63, 1.442695
    %v72 = vpow.pop %v71
    %v73 = vmul.f32 %v64, 1.442695
    %v74 = vpow.pop %v73
    %v75 = vmul.f32 %v65, 1.442695
    %v76 = vpow.pop %v75
    %v77 = vmul.f32 %v66, 1.442695
    %v78 = vpow.pop %v77
    %v79 = vmul.f32 %v67, 1.442695
    %v80 = vpow.pop %v79
    %v81 = vmul.f32 %v68, 1.442695
    %v82 = vpow.pop %v81
    %v83 = vmul.f32 %v69, 1.442695
    %v84 = vpow.pop %v83
    %v85 = vmul.f32 %v70, 1.442695
    %v86 = vpow.pop %v85
    %v87 = vmax.f32 %v39, 0.0
    %v88 = vmax.f32 %v40, 0.0
    %v89 = vmax.f32 %v41, 0.0
    %v90 = vmax.f32 %v42, 0.0
    %v91 = vmax.f32 %v43, 0.0
    %v92 = vmax.f32 %v44, 0.0
    %v93 = vmax.f32 %v45, 0.0
    %v94 = vmax.f32 %v46, 0.0
    %v95 = vmul.f32 %v39, %v47
    %v96 = vmul.f32 %v40, %v48
    %v97 = vmul.f32 %v41, %v49
    %v98 = vmul.f32 %v42, %v50
    %v99 = vmul.f32 %v43, %v51
    %v100 = vmul.f32 %v44, %v52
    %v101 = vmul.f32 %v45, %v53
    %v102 = vmul.f32 %v46, %v54
    %v103 = vsub.f32 %v87, %v95
    %v104 = vsub.f32 %v88, %v96
    %v105 = vsub.f32 %v89, %v97
    %v106 = vsub.f32 %v90, %v98
    %v107 = vsub.f32 %v91, %v99
    %v108 = vsub.f32 %v92, %v100
    %v109 = vsub.f32 %v93, %v101
    %v110 = vsub.f32 %v94, %v102
    %v111 = vadd.f32 %v72, 1.0
    %v112 = vadd.f32 %v74, 1.0
    %v113 = vadd.f32 %v76, 1.0
    %v114 = vadd.f32 %v78, 1.0
    %v115 = vadd.f32 %v80, 1.0
    %v116 = vadd.f32 %v82, 1.0
    %v117 = vadd.f32 %v84, 1.0
    %v118 = vadd.f32 %v86, 1.0
    %v119 = vlog2.pop %v111
    %v120 = vmul.f32 %v119, 0.6931472
    %v121 = vlog2.pop %v112
    %v122 = vmul.f32 %v121, 0.6931472
    %v123 = vlog2.pop %v113
    %v124 = vmul.f32 %v123, 0.6931472
    %v125 = vlog2.pop %v114
    %v126 = vmul.f32 %v125, 0.6931472
    %v127 = vlog2.pop %v115
    %v128 = vmul.f32 %v127, 0.6931472
    %v129 = vlog2.pop %v116
    %v130 = vmul.f32 %v129, 0.6931472
    %v131 = vlog2.pop %v117
    %v132 = vmul.f32 %v131, 0.6931472
    %v133 = vlog2.pop %v118
    %v134 = vmul.f32 %v133, 0.6931472
    %v135 = vadd.f32 %v103, %v120
    %v136 = vadd.f32 %v104, %v122
    %v137 = vadd.f32 %v105, %v124
    %v138 = vadd.f32 %v106, %v126
    %v139 = vadd.f32 %v107, %v128
    %v140 = vadd.f32 %v108, %v130
    %v141 = vadd.f32 %v109, %v132
    %v142 = vadd.f32 %v110, %v134
    %v143 = vrcp.pop %v111
    %v144 = vrcp.pop %v112
    %v145 = vrcp.pop %v113
    %v146 = vrcp.pop %v114
    %v147 = vrcp.pop %v115
    %v148 = vrcp.pop %v116
    %v149 = vrcp.pop %v117
    %v150 = vrcp.pop %v118
    %v151 = vmul.f32 %v111, %v143
    %v152 = vmul.f32 %v112, %v144
    %v153 = vmul.f32 %v113, %v145
    %v154 = vmul.f32 %v114, %v146
    %v155 = vmul.f32 %v115, %v147
    %v156 = vmul.f32 %v116, %v148
    %v157 = vmul.f32 %v117, %v149
    %v158 = vmul.f32 %v118, %v150
    %v159 = vsub.f32 2.0, %v151
    %v160 = vsub.f32 2.0, %v152
    %v161 = vsub.f32 2.0, %v153
    %v162 = vsub.f32 2.0, %v154
    %v163 = vsub.f32 2.0, %v155
    %v164 = vsub.f32 2.0, %v156
    %v165 = vsub.f32 2.0, %v157
    %v166 = vsub.f32 2.0, %v158
    %v167 = vmul.f32 %v143, %v159
    %v168 = vmul.f32 %v144, %v160
    %v169 = vmul.f32 %v145, %v161
    %v170 = vmul.f32 %v146, %v162
    %v171 = vmul.f32 %v147, %v163
    %v172 = vmul.f32 %v148, %v164
    %v173 = vmul.f32 %v149, %v165
    %v174 = vmul.f32 %v150, %v166
    %vm175 = vcmp.ge.f32.partialorder %v39, 0.0
    %vm176 = vcmp.ge.f32.partialorder %v40, 0.0
    %vm177 = vcmp.ge.f32.partialorder %v41, 0.0
    %vm178 = vcmp.ge.f32.partialorder %v42, 0.0
    %vm179 = vcmp.ge.f32.partialorder %v43, 0.0
    %vm180 = vcmp.ge.f32.partialorder %v44, 0.0
    %vm181 = vcmp.ge.f32.partialorder %v45, 0.0
    %vm182 = vcmp.ge.f32.partialorder %v46, 0.0
    %v183 = vmul.f32 %v72, %v167
    %v184 = vmul.f32 %v74, %v168
    %v185 = vmul.f32 %v76, %v169
    %v186 = vmul.f32 %v78, %v170
    %v187 = vmul.f32 %v80, %v171
    %v188 = vmul.f32 %v82, %v172
    %v189 = vmul.f32 %v84, %v173
    %v190 = vmul.f32 %v86, %v174
    %v191 = vsel %vm175, %v167, %v183
    %v192 = vsel %vm176, %v168, %v184
    %v193 = vsel %vm177, %v169, %v185
    %v194 = vsel %vm178, %v170, %v186
    %v195 = vsel %vm179, %v171, %v187
    %v196 = vsel %vm180, %v172, %v188
    %v197 = vsel %vm181, %v173, %v189
    %v198 = vsel %vm182, %v174, %v190
    %v199 = vmul.f32 %v47, 2.0
    %v200 = vmul.f32 %v48, 2.0
    %v201 = vmul.f32 %v49, 2.0
    %v202 = vmul.f32 %v50, 2.0
    %v203 = vmul.f32 %v51, 2.0
    %v204 = vmul.f32 %v52, 2.0
    %v205 = vmul.f32 %v53, 2.0
    %v206 = vmul.f32 %v54, 2.0
    %v207 = vsub.f32 %v199, 1.0
    %v208 = vsub.f32 %v200, 1.0
    %v209 = vsub.f32 %v201, 1.0
    %v210 = vsub.f32 %v202, 1.0
    %v211 = vsub.f32 %v203, 1.0
    %v212 = vsub.f32 %v204, 1.0
    %v213 = vsub.f32 %v205, 1.0
    %v214 = vsub.f32 %v206, 1.0
    %v215 = vmul.f32 %v207, %v191
    %v216 = vmul.f32 %v208, %v192
    %v217 = vmul.f32 %v209, %v193
    %v218 = vmul.f32 %v210, %v194
    %v219 = vmul.f32 %v211, %v195
    %v220 = vmul.f32 %v212, %v196
    %v221 = vmul.f32 %v213, %v197
    %v222 = vmul.f32 %v214, %v198
    %v223 = vsub.f32 1.0, %v47
    %v224 = vsub.f32 1.0, %v48
    %v225 = vsub.f32 1.0, %v49
    %v226 = vsub.f32 1.0, %v50
    %v227 = vsub.f32 1.0, %v51
    %v228 = vsub.f32 1.0, %v52
    %v229 = vsub.f32 1.0, %v53
    %v230 = vsub.f32 1.0, %v54
    %v231 = vadd.f32 %v223, %v215
    %v232 = vadd.f32 %v224, %v216
    %v233 = vadd.f32 %v225, %v217
    %v234 = vadd.f32 %v226, %v218
    %v235 = vadd.f32 %v227, %v219
    %v236 = vadd.f32 %v228, %v220
    %v237 = vadd.f32 %v229, %v221
    %v238 = vadd.f32 %v230, %v222
    %v239 = vsub.f32 %v47, %v215
    %v240 = vsub.f32 %v48, %v216
    %v241 = vsub.f32 %v49, %v217
    %v242 = vsub.f32 %v50, %v218
    %v243 = vsub.f32 %v51, %v219
    %v244 = vsub.f32 %v52, %v220
    %v245 = vsub.f32 %v53, %v221
    %v246 = vsub.f32 %v54, %v222
    %v247 = vmul.f32 %v47, -0.5
    %v248 = vmul.f32 %v48, -0.5
    %v249 = vmul.f32 %v49, -0.5
    %v250 = vmul.f32 %v50, -0.5
    %v251 = vmul.f32 %v51, -0.5
    %v252 = vmul.f32 %v52, -0.5
    %v253 = vmul.f32 %v53, -0.5
    %v254 = vmul.f32 %v54, -0.5
    %v255 = vadd.f32 %v247, 0.75
    %v256 = vadd.f32 %v248, 0.75
    %v257 = vadd.f32 %v249, 0.75
    %v258 = vadd.f32 %v250, 0.75
    %v259 = vadd.f32 %v251, 0.75
    %v260 = vadd.f32 %v252, 0.75
    %v261 = vadd.f32 %v253, 0.75
    %v262 = vadd.f32 %v254, 0.75
    %v263 = vmul.f32 %v239, %v239
    %v264 = vmul.f32 %v240, %v240
    %v265 = vmul.f32 %v241, %v241
    %v266 = vmul.f32 %v242, %v242
    %v267 = vmul.f32 %v243, %v243
    %v268 = vmul.f32 %v244, %v244
    %v269 = vmul.f32 %v245, %v245
    %v270 = vmul.f32 %v246, %v246
    %v271 = vmul.f32 %v255, %v263
    %v272 = vmul.f32 %v256, %v264
    %v273 = vmul.f32 %v257, %v265
    %v274 = vmul.f32 %v258, %v266
    %v275 = vmul.f32 %v259, %v267
    %v276 = vmul.f32 %v260, %v268
    %v277 = vmul.f32 %v261, %v269
    %v278 = vmul.f32 %v262, %v270
    %v279 = vmul.f32 %v271, %v135
    %v280 = vmul.f32 %v272, %v136
    %v281 = vmul.f32 %v273, %v137
    %v282 = vmul.f32 %v274, %v138
    %v283 = vmul.f32 %v275, %v139
    %v284 = vmul.f32 %v276, %v140
    %v285 = vmul.f32 %v277, %v141
    %v286 = vmul.f32 %v278, %v142
    %p287 = scmp.ne.s32.totalorder 0, 0
    // Predicated region
    $region18: #{tpu_custom_call.1} parent=1 // pred_check
      %p288 = pneg %p287
    $region19: #{tpu_custom_call.1} parent=1 // pred_check_branch
      %290 = sbr.rel (%p288) target = $region21
    $region20: #{tpu_custom_call.1} parent=1 // pred_region
      %v291 = vrot.slane %v279, 4
      %v292 = vadd.f32 %v279, %v291
      %v293 = vrot.slane %v292, 2
      %v294 = vadd.f32 %v292, %v293
      %v295 = vrot.slane %v294, 1
      %v296 = vadd.f32 %v294, %v295
      %v297 = vrot.slane %v280, 4
      %v298 = vadd.f32 %v280, %v297
      %v299 = vrot.slane %v298, 2
      %v300 = vadd.f32 %v298, %v299
      %v301 = vrot.slane %v300, 1
      %v302 = vadd.f32 %v300, %v301
      %v303 = vrot.slane %v281, 4
      %v304 = vadd.f32 %v281, %v303
      %v305 = vrot.slane %v304, 2
      %v306 = vadd.f32 %v304, %v305
      %v307 = vrot.slane %v306, 1
      %v308 = vadd.f32 %v306, %v307
      %v309 = vrot.slane %v282, 4
      %v310 = vadd.f32 %v282, %v309
      %v311 = vrot.slane %v310, 2
      %v312 = vadd.f32 %v310, %v311
      %v313 = vrot.slane %v312, 1
      %v314 = vadd.f32 %v312, %v313
      %v315 = vrot.slane %v283, 4
      %v316 = vadd.f32 %v283, %v315
      %v317 = vrot.slane %v316, 2
      %v318 = vadd.f32 %v316, %v317
      %v319 = vrot.slane %v318, 1
      %v320 = vadd.f32 %v318, %v319
      %v321 = vrot.slane %v284, 4
      %v322 = vadd.f32 %v284, %v321
      %v323 = vrot.slane %v322, 2
      %v324 = vadd.f32 %v322, %v323
      %v325 = vrot.slane %v324, 1
      %v326 = vadd.f32 %v324, %v325
      %v327 = vrot.slane %v285, 4
      %v328 = vadd.f32 %v285, %v327
      %v329 = vrot.slane %v328, 2
      %v330 = vadd.f32 %v328, %v329
      %v331 = vrot.slane %v330, 1
      %v332 = vadd.f32 %v330, %v331
      %v333 = vrot.slane %v286, 4
      %v334 = vadd.f32 %v286, %v333
      %v335 = vrot.slane %v334, 2
      %v336 = vadd.f32 %v334, %v335
      %v337 = vrot.slane %v336, 1
      %v338 = vadd.f32 %v336, %v337
      %v339 = vrot.slane %v271, 4
      %v340 = vadd.f32 %v271, %v339
      %v341 = vrot.slane %v340, 2
      %v342 = vadd.f32 %v340, %v341
      %v343 = vrot.slane %v342, 1
      %v344 = vadd.f32 %v342, %v343
      %v345 = vrot.slane %v272, 4
      %v346 = vadd.f32 %v272, %v345
      %v347 = vrot.slane %v346, 2
      %v348 = vadd.f32 %v346, %v347
      %v349 = vrot.slane %v348, 1
      %v350 = vadd.f32 %v348, %v349
      %v351 = vrot.slane %v273, 4
      %v352 = vadd.f32 %v273, %v351
      %v353 = vrot.slane %v352, 2
      %v354 = vadd.f32 %v352, %v353
      %v355 = vrot.slane %v354, 1
      %v356 = vadd.f32 %v354, %v355
      %v357 = vrot.slane %v274, 4
      %v358 = vadd.f32 %v274, %v357
      %v359 = vrot.slane %v358, 2
      %v360 = vadd.f32 %v358, %v359
      %v361 = vrot.slane %v360, 1
      %v362 = vadd.f32 %v360, %v361
      %v363 = vrot.slane %v275, 4
      %v364 = vadd.f32 %v275, %v363
      %v365 = vrot.slane %v364, 2
      %v366 = vadd.f32 %v364, %v365
      %v367 = vrot.slane %v366, 1
      %v368 = vadd.f32 %v366, %v367
      %v369 = vrot.slane %v276, 4
      %v370 = vadd.f32 %v276, %v369
      %v371 = vrot.slane %v370, 2
      %v372 = vadd.f32 %v370, %v371
      %v373 = vrot.slane %v372, 1
      %v374 = vadd.f32 %v372, %v373
      %v375 = vrot.slane %v277, 4
      %v376 = vadd.f32 %v277, %v375
      %v377 = vrot.slane %v376, 2
      %v378 = vadd.f32 %v376, %v377
      %v379 = vrot.slane %v378, 1
      %v380 = vadd.f32 %v378, %v379
      %v381 = vrot.slane %v278, 4
      %v382 = vadd.f32 %v278, %v381
      %v383 = vrot.slane %v382, 2
      %v384 = vadd.f32 %v382, %v383
      %v385 = vrot.slane %v384, 1
      %v386 = vadd.f32 %v384, %v385
      %v387 = vrot.slane %v231, 4
      %v388 = vadd.f32 %v231, %v387
      %v389 = vrot.slane %v388, 2
      %v390 = vadd.f32 %v388, %v389
      %v391 = vrot.slane %v390, 1
      %v392 = vadd.f32 %v390, %v391
      %v393 = vrot.slane %v232, 4
      %v394 = vadd.f32 %v232, %v393
      %v395 = vrot.slane %v394, 2
      %v396 = vadd.f32 %v394, %v395
      %v397 = vrot.slane %v396, 1
      %v398 = vadd.f32 %v396, %v397
      %v399 = vrot.slane %v233, 4
      %v400 = vadd.f32 %v233, %v399
      %v401 = vrot.slane %v400, 2
      %v402 = vadd.f32 %v400, %v401
      %v403 = vrot.slane %v402, 1
      %v404 = vadd.f32 %v402, %v403
      %v405 = vrot.slane %v234, 4
      %v406 = vadd.f32 %v234, %v405
      %v407 = vrot.slane %v406, 2
      %v408 = vadd.f32 %v406, %v407
      %v409 = vrot.slane %v408, 1
      %v410 = vadd.f32 %v408, %v409
      %v411 = vrot.slane %v235, 4
      %v412 = vadd.f32 %v235, %v411
      %v413 = vrot.slane %v412, 2
      %v414 = vadd.f32 %v412, %v413
      %v415 = vrot.slane %v414, 1
      %v416 = vadd.f32 %v414, %v415
      %v417 = vrot.slane %v236, 4
      %v418 = vadd.f32 %v236, %v417
      %v419 = vrot.slane %v418, 2
      %v420 = vadd.f32 %v418, %v419
      %v421 = vrot.slane %v420, 1
      %v422 = vadd.f32 %v420, %v421
      %v423 = vrot.slane %v237, 4
      %v424 = vadd.f32 %v237, %v423
      %v425 = vrot.slane %v424, 2
      %v426 = vadd.f32 %v424, %v425
      %v427 = vrot.slane %v426, 1
      %v428 = vadd.f32 %v426, %v427
      %v429 = vrot.slane %v238, 4
      %v430 = vadd.f32 %v238, %v429
      %v431 = vrot.slane %v430, 2
      %v432 = vadd.f32 %v430, %v431
      %v433 = vrot.slane %v432, 1
      %v434 = vadd.f32 %v432, %v433
      %vm435 = vcmask 1040384
      %v436 = vsel %vm435, %v296, %v344
      %v437 = vsel %vm435, %v302, %v350
      %v438 = vsel %vm435, %v308, %v356
      %v439 = vsel %vm435, %v314, %v362
      %v440 = vsel %vm435, %v320, %v368
      %v441 = vsel %vm435, %v326, %v374
      %v442 = vsel %vm435, %v332, %v380
      %v443 = vsel %vm435, %v338, %v386
      %vm444 = vcmask 1041408
      %v445 = vsel %vm444, %v436, %v392
      %v446 = vsel %vm444, %v437, %v398
      %v447 = vsel %vm444, %v438, %v404
      %v448 = vsel %vm444, %v439, %v410
      %v449 = vsel %vm444, %v440, %v416
      %v450 = vsel %vm444, %v441, %v422
      %v451 = vsel %vm444, %v442, %v428
      %v452 = vsel %vm444, %v443, %v434
      %v461 = vrot.slane %v446, 4
      %v462 = vrot.slane %v448, 4
      %v463 = vrot.slane %v450, 4
      %v464 = vrot.slane %v452, 4
      %vm465 = vcmask 1043456
      %v466 = vsel %vm465, %v445, %v461
      %v467 = vsel %vm465, %v447, %v462
      %v468 = vsel %vm465, %v449, %v463
      %v469 = vsel %vm465, %v451, %v464
      %474 = vst [vmem:[%s2] sm:$0x77] %v466
      %475 = vst [vmem:[%s2 + $0x8] sm:$0x77] %v467
      %476 = vst [vmem:[%s2 + $0x10] sm:$0x77] %v468
      %477 = vst [vmem:[%s2 + $0x18] sm:$0x77] %v469
    $region21: #{tpu_custom_call.1} parent=1 // pred_fallthru
      _
    %p478 = scmp.eq.s32.totalorder 0, 0
    // Predicated region
    $region22: #{tpu_custom_call.1} parent=1 // pred_check
      %p479 = pneg %p478
    $region23: #{tpu_custom_call.1} parent=1 // pred_check_branch
      %481 = sbr.rel (%p479) target = $region25
    $region24: #{tpu_custom_call.1} parent=1 // pred_region
      %v482 = vlaneseq
      %v483 = vshrl.u32 %v482, 7
      %v484 = vmul.u32 %v483, 1024
      %v485 = vlaneseq
      %v486 = vand.u32 %v485, 127
      %v487 = vadd.s32 %v486, 128
      %v488 = vadd.s32 %v486, 256
      %v489 = vadd.s32 %v486, 384
      %v490 = vadd.s32 %v486, 512
      %v491 = vadd.s32 %v486, 640
      %v492 = vadd.s32 %v486, 768
      %v493 = vadd.s32 %v486, 896
      %v494 = vadd.s32 %v484, %v486
      %v495 = vadd.s32 %v484, %v487
      %v496 = vadd.s32 %v484, %v488
      %v497 = vadd.s32 %v484, %v489
      %v498 = vadd.s32 %v484, %v490
      %v499 = vadd.s32 %v484, %v491
      %v500 = vadd.s32 %v484, %v492
      %v501 = vadd.s32 %v484, %v493
      %vm502 = vcmp.lt.s32.totalorder %v494, 8
      %vm503 = vcmp.lt.s32.totalorder %v495, 8
      %vm504 = vcmp.lt.s32.totalorder %v496, 8
      %vm505 = vcmp.lt.s32.totalorder %v497, 8
      %vm506 = vcmp.lt.s32.totalorder %v498, 8
      %vm507 = vcmp.lt.s32.totalorder %v499, 8
      %vm508 = vcmp.lt.s32.totalorder %v500, 8
      %vm509 = vcmp.lt.s32.totalorder %v501, 8
      %v510 = vsel %vm502, %v279, 0.0
      %v511 = vsel %vm503, %v280, 0.0
      %v512 = vsel %vm504, %v281, 0.0
      %v513 = vsel %vm505, %v282, 0.0
      %v514 = vsel %vm506, %v283, 0.0
      %v515 = vsel %vm507, %v284, 0.0
      %v516 = vsel %vm508, %v285, 0.0
      %v517 = vsel %vm509, %v286, 0.0
      %v518 = vsel %vm502, %v271, 0.0
      %v519 = vsel %vm503, %v272, 0.0
      %v520 = vsel %vm504, %v273, 0.0
      %v521 = vsel %vm505, %v274, 0.0
      %v522 = vsel %vm506, %v275, 0.0
      %v523 = vsel %vm507, %v276, 0.0
      %v524 = vsel %vm508, %v277, 0.0
      %v525 = vsel %vm509, %v278, 0.0
      %v526 = vsel %vm502, %v231, 0.0
      %v527 = vsel %vm503, %v232, 0.0
      %v528 = vsel %vm504, %v233, 0.0
      %v529 = vsel %vm505, %v234, 0.0
      %v530 = vsel %vm506, %v235, 0.0
      %v531 = vsel %vm507, %v236, 0.0
      %v532 = vsel %vm508, %v237, 0.0
      %v533 = vsel %vm509, %v238, 0.0
      %v534 = vrot.slane %v510, 4
      %v535 = vadd.f32 %v510, %v534
      %v536 = vrot.slane %v535, 2
      %v537 = vadd.f32 %v535, %v536
      %v538 = vrot.slane %v537, 1
      %v539 = vadd.f32 %v537, %v538
      %v540 = vrot.slane %v511, 4
      %v541 = vadd.f32 %v511, %v540
      %v542 = vrot.slane %v541, 2
      %v543 = vadd.f32 %v541, %v542
      %v544 = vrot.slane %v543, 1
      %v545 = vadd.f32 %v543, %v544
      %v546 = vrot.slane %v512, 4
      %v547 = vadd.f32 %v512, %v546
      %v548 = vrot.slane %v547, 2
      %v549 = vadd.f32 %v547, %v548
      %v550 = vrot.slane %v549, 1
      %v551 = vadd.f32 %v549, %v550
      %v552 = vrot.slane %v513, 4
      %v553 = vadd.f32 %v513, %v552
      %v554 = vrot.slane %v553, 2
      %v555 = vadd.f32 %v553, %v554
      %v556 = vrot.slane %v555, 1
      %v557 = vadd.f32 %v555, %v556
      %v558 = vrot.slane %v514, 4
      %v559 = vadd.f32 %v514, %v558
      %v560 = vrot.slane %v559, 2
      %v561 = vadd.f32 %v559, %v560
      %v562 = vrot.slane %v561, 1
      %v563 = vadd.f32 %v561, %v562
      %v564 = vrot.slane %v515, 4
      %v565 = vadd.f32 %v515, %v564
      %v566 = vrot.slane %v565, 2
      %v567 = vadd.f32 %v565, %v566
      %v568 = vrot.slane %v567, 1
      %v569 = vadd.f32 %v567, %v568
      %v570 = vrot.slane %v516, 4
      %v571 = vadd.f32 %v516, %v570
      %v572 = vrot.slane %v571, 2
      %v573 = vadd.f32 %v571, %v572
      %v574 = vrot.slane %v573, 1
      %v575 = vadd.f32 %v573, %v574
      %v576 = vrot.slane %v517, 4
      %v577 = vadd.f32 %v517, %v576
      %v578 = vrot.slane %v577, 2
      %v579 = vadd.f32 %v577, %v578
      %v580 = vrot.slane %v579, 1
      %v581 = vadd.f32 %v579, %v580
      %v582 = vrot.slane %v518, 4
      %v583 = vadd.f32 %v518, %v582
      %v584 = vrot.slane %v583, 2
      %v585 = vadd.f32 %v583, %v584
      %v586 = vrot.slane %v585, 1
      %v587 = vadd.f32 %v585, %v586
      %v588 = vrot.slane %v519, 4
      %v589 = vadd.f32 %v519, %v588
      %v590 = vrot.slane %v589, 2
      %v591 = vadd.f32 %v589, %v590
      %v592 = vrot.slane %v591, 1
      %v593 = vadd.f32 %v591, %v592
      %v594 = vrot.slane %v520, 4
      %v595 = vadd.f32 %v520, %v594
      %v596 = vrot.slane %v595, 2
      %v597 = vadd.f32 %v595, %v596
      %v598 = vrot.slane %v597, 1
      %v599 = vadd.f32 %v597, %v598
      %v600 = vrot.slane %v521, 4
      %v601 = vadd.f32 %v521, %v600
      %v602 = vrot.slane %v601, 2
      %v603 = vadd.f32 %v601, %v602
      %v604 = vrot.slane %v603, 1
      %v605 = vadd.f32 %v603, %v604
      %v606 = vrot.slane %v522, 4
      %v607 = vadd.f32 %v522, %v606
      %v608 = vrot.slane %v607, 2
      %v609 = vadd.f32 %v607, %v608
      %v610 = vrot.slane %v609, 1
      %v611 = vadd.f32 %v609, %v610
      %v612 = vrot.slane %v523, 4
      %v613 = vadd.f32 %v523, %v612
      %v614 = vrot.slane %v613, 2
      %v615 = vadd.f32 %v613, %v614
      %v616 = vrot.slane %v615, 1
      %v617 = vadd.f32 %v615, %v616
      %v618 = vrot.slane %v524, 4
      %v619 = vadd.f32 %v524, %v618
      %v620 = vrot.slane %v619, 2
      %v621 = vadd.f32 %v619, %v620
      %v622 = vrot.slane %v621, 1
      %v623 = vadd.f32 %v621, %v622
      %v624 = vrot.slane %v525, 4
      %v625 = vadd.f32 %v525, %v624
      %v626 = vrot.slane %v625, 2
      %v627 = vadd.f32 %v625, %v626
      %v628 = vrot.slane %v627, 1
      %v629 = vadd.f32 %v627, %v628
      %v630 = vrot.slane %v526, 4
      %v631 = vadd.f32 %v526, %v630
      %v632 = vrot.slane %v631, 2
      %v633 = vadd.f32 %v631, %v632
      %v634 = vrot.slane %v633, 1
      %v635 = vadd.f32 %v633, %v634
      %v636 = vrot.slane %v527, 4
      %v637 = vadd.f32 %v527, %v636
      %v638 = vrot.slane %v637, 2
      %v639 = vadd.f32 %v637, %v638
      %v640 = vrot.slane %v639, 1
      %v641 = vadd.f32 %v639, %v640
      %v642 = vrot.slane %v528, 4
      %v643 = vadd.f32 %v528, %v642
      %v644 = vrot.slane %v643, 2
      %v645 = vadd.f32 %v643, %v644
      %v646 = vrot.slane %v645, 1
      %v647 = vadd.f32 %v645, %v646
      %v648 = vrot.slane %v529, 4
      %v649 = vadd.f32 %v529, %v648
      %v650 = vrot.slane %v649, 2
      %v651 = vadd.f32 %v649, %v650
      %v652 = vrot.slane %v651, 1
      %v653 = vadd.f32 %v651, %v652
      %v654 = vrot.slane %v530, 4
      %v655 = vadd.f32 %v530, %v654
      %v656 = vrot.slane %v655, 2
      %v657 = vadd.f32 %v655, %v656
      %v658 = vrot.slane %v657, 1
      %v659 = vadd.f32 %v657, %v658
      %v660 = vrot.slane %v531, 4
      %v661 = vadd.f32 %v531, %v660
      %v662 = vrot.slane %v661, 2
      %v663 = vadd.f32 %v661, %v662
      %v664 = vrot.slane %v663, 1
      %v665 = vadd.f32 %v663, %v664
      %v666 = vrot.slane %v532, 4
      %v667 = vadd.f32 %v532, %v666
      %v668 = vrot.slane %v667, 2
      %v669 = vadd.f32 %v667, %v668
      %v670 = vrot.slane %v669, 1
      %v671 = vadd.f32 %v669, %v670
      %v672 = vrot.slane %v533, 4
      %v673 = vadd.f32 %v533, %v672
      %v674 = vrot.slane %v673, 2
      %v675 = vadd.f32 %v673, %v674
      %v676 = vrot.slane %v675, 1
      %v677 = vadd.f32 %v675, %v676
      %vm678 = vcmask 1040384
      %v679 = vsel %vm678, %v539, %v587
      %v680 = vsel %vm678, %v545, %v593
      %v681 = vsel %vm678, %v551, %v599
      %v682 = vsel %vm678, %v557, %v605
      %v683 = vsel %vm678, %v563, %v611
      %v684 = vsel %vm678, %v569, %v617
      %v685 = vsel %vm678, %v575, %v623
      %v686 = vsel %vm678, %v581, %v629
      %vm687 = vcmask 1041408
      %v688 = vsel %vm687, %v679, %v635
      %v689 = vsel %vm687, %v680, %v641
      %v690 = vsel %vm687, %v681, %v647
      %v691 = vsel %vm687, %v682, %v653
      %v692 = vsel %vm687, %v683, %v659
      %v693 = vsel %vm687, %v684, %v665
      %v694 = vsel %vm687, %v685, %v671
      %v695 = vsel %vm687, %v686, %v677
      %v704 = vrot.slane %v689, 4
      %v705 = vrot.slane %v691, 4
      %v706 = vrot.slane %v693, 4
      %v707 = vrot.slane %v695, 4
      %vm708 = vcmask 1043456
      %v709 = vsel %vm708, %v688, %v704
      %v710 = vsel %vm708, %v690, %v705
      %v711 = vsel %vm708, %v692, %v706
      %v712 = vsel %vm708, %v694, %v707
      %717 = vst [vmem:[%s2] sm:$0x77] %v709
      %718 = vst [vmem:[%s2 + $0x8] sm:$0x77] %v710
      %719 = vst [vmem:[%s2 + $0x10] sm:$0x77] %v711
      %720 = vst [vmem:[%s2 + $0x18] sm:$0x77] %v712
    $region25: #{tpu_custom_call.1} parent=1 // pred_fallthru
      _
    // Predicated region
    $region26: #{tpu_custom_call.1} parent=1 // pred_check
      _
    $region27: #{tpu_custom_call.1} parent=1 // pred_check_branch
      %722 = sbr.rel (0) target = $region29
    $region28: #{tpu_custom_call.1} parent=1 // pred_region
      _
    $region29: #{tpu_custom_call.1} parent=1 // pred_fallthru
      _
    // Predicated region
    $region30: #{tpu_custom_call.1} parent=1 // pred_check
      _
    $region31: #{tpu_custom_call.1} parent=1 // pred_check_branch
      %724 = sbr.rel (0) target = $region33
    $region32: #{tpu_custom_call.1} parent=1 // pred_region
      _
    $region33: #{tpu_custom_call.1} parent=1 // pred_fallthru
      _
    %725 = vsyncpa [#allocation3], 1
    %726 = vsyncpa [#allocation5], 1

</llo_original>
